<compile_context>
chip_gen: v5e
topology: v5e:2x2
jax: 0.10.0
libtpu: 0.0.40
codegen_flags: <defaults>
</compile_context>

<pallas_src>
import functools

import jax
import jax.numpy as jnp
from jax.experimental import pallas as pl
from jax.experimental.pallas import tpu as pltpu


def _fused_mlp_kernel(*refs, num_layers: int):
    # refs = (x_ref, w0, b0, w1, b1, ..., w_{L-1}, b_{L-1}, o_ref)
    # Batch-on-lanes layout:
    #   x_ref: (in_f, tb)          features on sublanes, batch on lanes
    #   w_l:   (out_f_l, in_f_l)   native PyTorch layout (no transpose)
    #   b_l:   (out_f_l, 1)        broadcast across the batch lanes
    #   o_ref: (out_dim, tb)       lane-dense store even for out_dim == 1
    x_ref = refs[0]
    o_ref = refs[-1]
    h = x_ref[...]
    for l in range(num_layers):
        w = refs[1 + 2 * l][...]
        b = refs[2 + 2 * l][...]
        # h = W @ h : contraction over the (small) feature dim, batch is the
        # MXU N dimension.  f32 accumulation regardless of operand dtype.
        h = jnp.dot(w, h.astype(w.dtype), preferred_element_type=jnp.float32) + b
        if l != num_layers - 1:        # no activation after the final Linear
            h = jnp.maximum(h, 0.0)
    o_ref[...] = h.astype(o_ref.dtype)


def feed_forward_network(x, params, *, batch_tile=4096,
                         compute_dtype=jnp.float32):
    """Fused forward pass matching FeedForwardNetwork.forward().

    x:      (B, input_dim) float32
    params: list of (w, b) with w of shape (out_f, in_f) -- the native PyTorch
            nn.Linear layout -- and b of shape (out_f, 1).
    batch_tile:    batch tile for the pipelined path (multiple of 128).
    compute_dtype: operand dtype for x / weights (use jnp.bfloat16 on v6e/v7x
                   for ~2x less HBM traffic; accumulation stays f32).
    """
    B, in_f = x.shape
    num_layers = len(params)
    out_f = params[-1][0].shape[0]

    # Batch on lanes: stream x as (in_f, B); kernel produces (out_f, B).
    x_t = x.T.astype(compute_dtype)

    flat = []
    for w, b in params:
        flat.extend((w.astype(compute_dtype), b.astype(jnp.float32)))

    kernel = functools.partial(_fused_mlp_kernel, num_layers=num_layers)

    flops = 2 * B * sum(int(w.shape[0]) * int(w.shape[1]) for w, _ in params)
    bytes_accessed = int(
        x_t.size * x_t.dtype.itemsize
        + sum(w.size * jnp.dtype(compute_dtype).itemsize + b.size * 4
              for w, b in params)
        + B * out_f * jnp.dtype(x.dtype).itemsize)
    cost = pl.CostEstimate(flops=flops, transcendentals=0,
                           bytes_accessed=bytes_accessed)

    if B <= batch_tile:
        # Small batch: one shot, no grid / pipeline prologue.  Inputs, weights
        # and the output are whole-array VMEM residents (tiny at these sizes).
        vmem = pl.BlockSpec(memory_space=pltpu.MemorySpace.VMEM)
        out_t = pl.pallas_call(
            kernel,
            out_shape=jax.ShapeDtypeStruct((out_f, B), x.dtype),
            in_specs=[vmem] * (1 + len(flat)),
            out_specs=vmem,
            cost_estimate=cost,
        )(x_t, *flat)
        return out_t.T

    # Pipelined path: pad the batch axis so every tile is full (zero columns
    # only produce throwaway outputs that are sliced off below), guaranteeing
    # the tiled path is always taken with >= 2 grid steps.
    n_tiles = pl.cdiv(B, batch_tile)
    b_pad = n_tiles * batch_tile
    if b_pad != B:
        x_t = jnp.pad(x_t, ((0, 0), (0, b_pad - B)))

    in_specs = [pl.BlockSpec((in_f, batch_tile), lambda i: (0, i))]
    for w, b in params:
        # Grid-invariant weights/biases: constant index_map -> DMA'd once and
        # VMEM-resident across all grid steps.
        in_specs.append(pl.BlockSpec(w.shape, lambda i: (0, 0)))
        in_specs.append(pl.BlockSpec(b.shape, lambda i: (0, 0)))

    out_t = pl.pallas_call(
        kernel,
        out_shape=jax.ShapeDtypeStruct((out_f, b_pad), x.dtype),
        grid=(n_tiles,),
        in_specs=in_specs,
        out_specs=pl.BlockSpec((out_f, batch_tile), lambda i: (0, i)),
        compiler_params=pltpu.CompilerParams(
            dimension_semantics=("parallel",)),
        cost_estimate=cost,
    )(x_t, *flat)
    return out_t[:, :B].T


def init_ffn_params(key, input_dim, hidden_layer_widths, output_dim):
    """torch.nn.Linear-style init (uniform +/- 1/sqrt(fan_in)).

    Stored in the NATIVE PyTorch layout: weight (out_f, in_f), bias (out_f, 1)
    -- exactly what the batch-on-lanes kernel consumes, so the forward never
    pays a transpose.
    """
    assert len(hidden_layer_widths) >= 1
    dims = [input_dim] + list(hidden_layer_widths) + [output_dim]
    params = []
    for i in range(len(dims) - 1):
        fan_in, fan_out = dims[i], dims[i + 1]
        key, kw, kb = jax.random.split(key, 3)
        bound = 1.0 / jnp.sqrt(jnp.float32(fan_in))
        w = jax.random.uniform(kw, (fan_out, fan_in), jnp.float32, -bound, bound)
        b = jax.random.uniform(kb, (fan_out, 1), jnp.float32, -bound, bound)
        params.append((w, b))
    return params


if __name__ == "__main__":
    key = jax.random.PRNGKey(0)

    # Small shapes consistent with the 1-D function-regression MLP.
    input_dim = 4
    hidden_layer_widths = [32, 32]
    output_dim = 1

    k_x, k_x2, k_p = jax.random.split(key, 3)
    params = init_ffn_params(k_p, input_dim, hidden_layer_widths, output_dim)

    def reference(x, params):
        h = x
        for i, (w, b) in enumerate(params):
            h = h @ w.T + b.T
            if i != len(params) - 1:
                h = jnp.maximum(h, 0.0)
        return h

    forward = jax.jit(feed_forward_network,
                      static_argnames=("batch_tile", "compute_dtype"))

    # 1) Small batch -> gridless whole-VMEM path.
    batch = 8
    x = jax.random.normal(k_x, (batch, input_dim), jnp.float32)
    y = jax.block_until_ready(forward(x, params))
    assert y.shape == (batch, output_dim)
    assert jnp.allclose(y, reference(x, params), atol=1e-5, rtol=1e-5)

    # 2) Non-multiple-of-tile batch -> padded, batch-tiled pipelined path
    #    (small tile here just to exercise the multi-step parallel grid).
    batch2 = 1000
    x2 = jax.random.normal(k_x2, (batch2, input_dim), jnp.float32)
    y2 = jax.block_until_ready(forward(x2, params, batch_tile=256))
    assert y2.shape == (batch2, output_dim)
    assert jnp.allclose(y2, reference(x2, params), atol=1e-5, rtol=1e-5)

    print("KERNEL_OK")
</pallas_src>

<mosaic_0001>
module attributes {stable_mosaic.version = 11 : i64} {
  func.func @_fused_mlp_kernel(%arg0: memref<4x8xf32, #tpu.memory_space<vmem>>, %arg1: memref<32x4xf32, #tpu.memory_space<vmem>>, %arg2: memref<32x1xf32, #tpu.memory_space<vmem>>, %arg3: memref<32x32xf32, #tpu.memory_space<vmem>>, %arg4: memref<32x1xf32, #tpu.memory_space<vmem>>, %arg5: memref<1x32xf32, #tpu.memory_space<vmem>>, %arg6: memref<1x1xf32, #tpu.memory_space<vmem>>, %arg7: memref<1x8xf32, #tpu.memory_space<vmem>>) attributes {dimension_semantics = [], scalar_prefetch = 0 : i64, scratch_operands = 0 : i64, tpu.core_type = #tpu.core_type<tc>} {
    %c0 = arith.constant 0 : index
    %c0_0 = arith.constant 0 : index
    %0 = vector.load %arg0[%c0, %c0_0] : memref<4x8xf32, #tpu.memory_space<vmem>>, vector<4x8xf32>
    %c0_1 = arith.constant 0 : index
    %c0_2 = arith.constant 0 : index
    %1 = vector.load %arg1[%c0_1, %c0_2] : memref<32x4xf32, #tpu.memory_space<vmem>>, vector<32x4xf32>
    %c0_3 = arith.constant 0 : index
    %c0_4 = arith.constant 0 : index
    %2 = vector.load %arg2[%c0_3, %c0_4] : memref<32x1xf32, #tpu.memory_space<vmem>>, vector<32x1xf32>
    %cst = arith.constant dense<0.000000e+00> : vector<32x8xf32>
    %3 = tpu.matmul %1, %0, %cst {dimension_numbers = #tpu.dot_dimension_numbers<[1], [0], [0], [1], [0, 0, 1, 1], [], []>} : vector<32x4xf32>, vector<4x8xf32>, vector<32x8xf32> -> vector<32x8xf32>
    %4 = vector.broadcast %2 : vector<32x1xf32> to vector<32x8xf32>
    %5 = arith.addf %3, %4 : vector<32x8xf32>
    %cst_5 = arith.constant 0.000000e+00 : f32
    %6 = vector.broadcast %cst_5 : f32 to vector<32x8xf32>
    %7 = arith.maximumf %5, %6 : vector<32x8xf32>
    %c0_6 = arith.constant 0 : index
    %c0_7 = arith.constant 0 : index
    %8 = vector.load %arg3[%c0_6, %c0_7] : memref<32x32xf32, #tpu.memory_space<vmem>>, vector<32x32xf32>
    %c0_8 = arith.constant 0 : index
    %c0_9 = arith.constant 0 : index
    %9 = vector.load %arg4[%c0_8, %c0_9] : memref<32x1xf32, #tpu.memory_space<vmem>>, vector<32x1xf32>
    %cst_10 = arith.constant dense<0.000000e+00> : vector<32x8xf32>
    %10 = tpu.matmul %8, %7, %cst_10 {dimension_numbers = #tpu.dot_dimension_numbers<[1], [0], [0], [1], [0, 0, 1, 1], [], []>} : vector<32x32xf32>, vector<32x8xf32>, vector<32x8xf32> -> vector<32x8xf32>
    %11 = vector.broadcast %9 : vector<32x1xf32> to vector<32x8xf32>
    %12 = arith.addf %10, %11 : vector<32x8xf32>
    %cst_11 = arith.constant 0.000000e+00 : f32
    %13 = vector.broadcast %cst_11 : f32 to vector<32x8xf32>
    %14 = arith.maximumf %12, %13 : vector<32x8xf32>
    %c0_12 = arith.constant 0 : index
    %c0_13 = arith.constant 0 : index
    %15 = vector.load %arg5[%c0_12, %c0_13] : memref<1x32xf32, #tpu.memory_space<vmem>>, vector<1x32xf32>
    %c0_14 = arith.constant 0 : index
    %c0_15 = arith.constant 0 : index
    %16 = vector.load %arg6[%c0_14, %c0_15] : memref<1x1xf32, #tpu.memory_space<vmem>>, vector<1x1xf32>
    %cst_16 = arith.constant dense<0.000000e+00> : vector<1x8xf32>
    %17 = tpu.matmul %15, %14, %cst_16 {dimension_numbers = #tpu.dot_dimension_numbers<[1], [0], [0], [1], [0, 0, 1, 1], [], []>} : vector<1x32xf32>, vector<32x8xf32>, vector<1x8xf32> -> vector<1x8xf32>
    %18 = vector.broadcast %16 : vector<1x1xf32> to vector<1x8xf32>
    %19 = arith.addf %17, %18 : vector<1x8xf32>
    %c0_17 = arith.constant 0 : index
    %c0_18 = arith.constant 0 : index
    %20 = vector.load %arg7[%c0_17, %c0_18] : memref<1x8xf32, #tpu.memory_space<vmem>>, vector<1x8xf32>
    tpu.vector_store %arg7[%c0_17, %c0_18], %19 {strides = array<i32>} : memref<1x8xf32, #tpu.memory_space<vmem>>, vector<1x8xf32>,
    return
  }
}

</mosaic_0001>

<llo_original>
// kernel: feed_forward_network.1
$region0: #{feed_forward_network.1}
  #allocation0 [shape = 'u32[]', space=smem, size = 0x4, offset = 0x4, fixed_abs, tag = 'smem constant byte address 0x4 - core index']
  #allocation1 [shape = 'u32[72,128]{1,0:T(1,128)}', space=vmem, size = 0x9000, scoped, tag = 'internal scratch']
  #allocation2 [shape = 'f32[1,1]{1,0:T(1,128)S(1)}', space=vmem, size = 0x200, scoped, tag = 'scoped memory for feed_forward_network.1']
  %s0 = inlined_call_operand.vmem [shape: f32[4,8], index: 0, kind: input, shape index: {}]
  %s1 = inlined_call_operand.vmem [shape: f32[32,4], index: 1, kind: input, shape index: {}]
  %s2 = inlined_call_operand.vmem [shape: f32[32,1], index: 2, kind: input, shape index: {}]
  %s3 = inlined_call_operand.vmem [shape: f32[32,32], index: 3, kind: input, shape index: {}]
  %s4 = inlined_call_operand.vmem [shape: f32[32,1], index: 4, kind: input, shape index: {}]
  %s5 = inlined_call_operand.vmem [shape: f32[1,32], index: 5, kind: input, shape index: {}]
  %s6 = inlined_call_operand.<no memory space> [shape: f32[1,1], index: 6, kind: input, shape index: {}]
  %s7 = inlined_call_operand.hbm [shape: f32[1,8], index: 7, kind: output, shape index: {}]
  %s8 = sld [smem:[#allocation0]]
  $region38: #{feed_forward_network.1} parent=0
    _
  %s10 = ssub.s32 1, %s8
  %s11 = scalar_select 0, %s10, %s8
  %v12 = vstv %s6
  %13 = vst [vmem:[#allocation2] sm:$0x1] %v12
  $region1: #{feed_forward_network.1} parent=0
    #allocation3 [shape = 'u8[512]{0}', space=vmem, size = 0x400, scoped, tag = 'output window, operand 0, single buffered']
    #allocation4 [shape = 's32[1]{0}', space=sflag, size = 0x4, scoped, tag = 'scoped memory for feed_forward_network.1']
    %14 = vsyncpa [#allocation4], 0
    // Predicated region
    $region2: #{feed_forward_network.1} parent=1 // pred_check
      _
    $region3: #{feed_forward_network.1} parent=1 // pred_check_branch
      %16 = sbr.rel (0) target = $region5
    $region4: #{feed_forward_network.1} parent=1 // pred_region
      _
    $region5: #{feed_forward_network.1} parent=1 // pred_fallthru
      _
    // Predicated region
    $region6: #{feed_forward_network.1} parent=1 // pred_check
      _
    $region7: #{feed_forward_network.1} parent=1 // pred_check_branch
      %18 = sbr.rel (0) target = $region9
    $region8: #{feed_forward_network.1} parent=1 // pred_region
      _
    $region9: #{feed_forward_network.1} parent=1 // pred_fallthru
      _
    // Predicated region
    $region10: #{feed_forward_network.1} parent=1 // pred_check
      _
    $region11: #{feed_forward_network.1} parent=1 // pred_check_branch
      %20 = sbr.rel (0) target = $region13
    $region12: #{feed_forward_network.1} parent=1 // pred_region
      _
    $region13: #{feed_forward_network.1} parent=1 // pred_fallthru
      _
    // Predicated region
    $region14: #{feed_forward_network.1} parent=1 // pred_check
      _
    $region15: #{feed_forward_network.1} parent=1 // pred_check_branch
      %22 = sbr.rel (0) target = $region17
    $region16: #{feed_forward_network.1} parent=1 // pred_region
      _
    $region17: #{feed_forward_network.1} parent=1 // pred_fallthru
      _
    // Predicated region
    $region18: #{feed_forward_network.1} parent=1 // pred_check
      _
    $region19: #{feed_forward_network.1} parent=1 // pred_check_branch
      %24 = sbr.rel (0) target = $region21
    $region20: #{feed_forward_network.1} parent=1 // pred_region
      _
    $region21: #{feed_forward_network.1} parent=1 // pred_fallthru
      _
    // Predicated region
    $region22: #{feed_forward_network.1} parent=1 // pred_check
      _
    $region23: #{feed_forward_network.1} parent=1 // pred_check_branch
      %26 = sbr.rel (0) target = $region25
    $region24: #{feed_forward_network.1} parent=1 // pred_region
      _
    $region25: #{feed_forward_network.1} parent=1 // pred_fallthru
      _
    // Predicated region
    $region26: #{feed_forward_network.1} parent=1 // pred_check
      _
    $region27: #{feed_forward_network.1} parent=1 // pred_check_branch
      %28 = sbr.rel (0) target = $region29
    $region28: #{feed_forward_network.1} parent=1 // pred_region
      _
    $region29: #{feed_forward_network.1} parent=1 // pred_fallthru
      _
    %v29 = vld [vmem:[%s0] sm:$0xf]
    %v30 = vld [vmem:[%s1] sm:$0xff]
    %v31 = vld [vmem:[%s1 + $0x8] sm:$0xff]
    %v32 = vld [vmem:[%s1 + $0x10] sm:$0xff]
    %v33 = vld [vmem:[%s1 + $0x18] sm:$0xff]
    %v34 = vld [vmem:[%s2] sm:$0xff]
    %v35 = vld [vmem:[%s2 + $0x8] sm:$0xff]
    %v36 = vld [vmem:[%s2 + $0x10] sm:$0xff]
    %v37 = vld [vmem:[%s2 + $0x18] sm:$0xff]
    %39 = vset.pattern.permute.xlu0 0
    %40 = vperm.xlu0 %39, %v34
    %v41 = vpop.permute.xlu0 %40
    %44 = vset.pattern.permute.xlu0 0
    %45 = vperm.xlu0 %44, %v35
    %v46 = vpop.permute.xlu0 %45
    %49 = vset.pattern.permute.xlu0 0
    %50 = vperm.xlu0 %49, %v36
    %v51 = vpop.permute.xlu0 %50
    %54 = vset.pattern.permute.xlu0 0
    %55 = vperm.xlu0 %54, %v37
    %v56 = vpop.permute.xlu0 %55
    %vm58 = vcmask 31744
    %v60 = vsel %vm58, %v30, 0
    %v63 = vsel %vm58, %v31, 0
    %v66 = vsel %vm58, %v32, 0
    %v69 = vsel %vm58, %v33, 0
    %vm71 = vcmask 1043456
    %v73 = vsel %vm71, %v29, 0
    %75 = vmatpush.msra.mxu0 0.0
    %76 = vmatpush.msra.mxu0 0.0
    %77 = vmatpush.msra.mxu0 0.0
    %78 = vmatpush.msra.mxu0 0.0
    %79 = vmatpush.msra.mxu0 0.0
    %80 = vmatpush.msra.mxu0 0.0
    %81 = vmatpush.msra.mxu0 0.0
    %82 = vmatpush.msra.mxu0 0.0
    %83 = vmatpush.msra.mxu0 0.0
    %84 = vmatpush.msra.mxu0 0.0
    %85 = vmatpush.msra.mxu0 0.0
    %86 = vmatpush.msra.mxu0 0.0
    %87 = vmatpush.msra.mxu0 0.0
    %88 = vmatpush.msra.mxu0 0.0
    %89 = vmatpush.msra.mxu0 0.0
    %90 = vmatpush.msra.mxu0 %v73
    %91 = vmatmul.f32.gmra.mxu0 %v60
    %v92 = vpop.f32.mrf.mxu0
    %v93 = vadd.f32 %v41, %v92
    %94 = vmatmul.f32.gmra.mxu0 %v63
    %v95 = vpop.f32.mrf.mxu0
    %v96 = vadd.f32 %v46, %v95
    %97 = vmatmul.f32.gmra.mxu0 %v66
    %v98 = vpop.f32.mrf.mxu0
    %v99 = vadd.f32 %v51, %v98
    %100 = vmatmul.f32.gmra.mxu0 %v69
    %v101 = vpop.f32.mrf.mxu0
    %v102 = vadd.f32 %v56, %v101
    %103 = vdwg.mxu0
    %v104 = vmax.f32 %v93, 0.0
    %v105 = vmax.f32 %v96, 0.0
    %v106 = vmax.f32 %v99, 0.0
    %v107 = vmax.f32 %v102, 0.0
    %v108 = vld [vmem:[%s3] sm:$0xff]
    %v109 = vld [vmem:[%s3 + $0x8] sm:$0xff]
    %v110 = vld [vmem:[%s3 + $0x10] sm:$0xff]
    %v111 = vld [vmem:[%s3 + $0x18] sm:$0xff]
    %v112 = vld [vmem:[%s4] sm:$0xff]
    %v113 = vld [vmem:[%s4 + $0x8] sm:$0xff]
    %v114 = vld [vmem:[%s4 + $0x10] sm:$0xff]
    %v115 = vld [vmem:[%s4 + $0x18] sm:$0xff]
    %117 = vset.pattern.permute.xlu0 0
    %118 = vperm.xlu0 %117, %v112
    %v119 = vpop.permute.xlu0 %118
    %122 = vset.pattern.permute.xlu0 0
    %123 = vperm.xlu0 %122, %v113
    %v124 = vpop.permute.xlu0 %123
    %127 = vset.pattern.permute.xlu0 0
    %128 = vperm.xlu0 %127, %v114
    %v129 = vpop.permute.xlu0 %128
    %132 = vset.pattern.permute.xlu0 0
    %133 = vperm.xlu0 %132, %v115
    %v134 = vpop.permute.xlu0 %133
    %vm136 = vcmask 261120
    %v138 = vsel %vm136, %v108, 0
    %v141 = vsel %vm136, %v109, 0
    %v144 = vsel %vm136, %v110, 0
    %v147 = vsel %vm136, %v111, 0
    %149 = vmatpush.msra.mxu0 0.0
    %150 = vmatpush.msra.mxu0 0.0
    %151 = vmatpush.msra.mxu0 0.0
    %152 = vmatpush.msra.mxu0 0.0
    %153 = vmatpush.msra.mxu0 0.0
    %154 = vmatpush.msra.mxu0 0.0
    %155 = vmatpush.msra.mxu0 0.0
    %156 = vmatpush.msra.mxu0 0.0
    %157 = vmatpush.msra.mxu0 0.0
    %158 = vmatpush.msra.mxu0 0.0
    %159 = vmatpush.msra.mxu0 0.0
    %160 = vmatpush.msra.mxu0 0.0
    %161 = vmatpush.msra.mxu0 %v107
    %162 = vmatpush.msra.mxu0 %v106
    %163 = vmatpush.msra.mxu0 %v105
    %164 = vmatpush.msra.mxu0 %v104
    %165 = vmatmul.f32.gmra.mxu0 %v138
    %v166 = vpop.f32.mrf.mxu0
    %v167 = vadd.f32 %v119, %v166
    %168 = vmatmul.f32.gmra.mxu0 %v141
    %v169 = vpop.f32.mrf.mxu0
    %v170 = vadd.f32 %v124, %v169
    %171 = vmatmul.f32.gmra.mxu0 %v144
    %v172 = vpop.f32.mrf.mxu0
    %v173 = vadd.f32 %v129, %v172
    %174 = vmatmul.f32.gmra.mxu0 %v147
    %v175 = vpop.f32.mrf.mxu0
    %v176 = vadd.f32 %v134, %v175
    %177 = vdwg.mxu0
    %v178 = vmax.f32 %v167, 0.0
    %v179 = vmax.f32 %v170, 0.0
    %v180 = vmax.f32 %v173, 0.0
    %v181 = vmax.f32 %v176, 0.0
    %v182 = vld [vmem:[%s5] sm:$0x1]
    %v183 = vld [vmem:[#allocation2] sm:$0x1]
    %185 = vset.pattern.permute.xlu0 0
    %186 = vperm.xlu0 %185, %v183
    %v187 = vpop.permute.xlu0 %186
    %v189 = vperm.slane %v187, 0
    %v191 = vsel %vm136, %v182, 0
    %193 = vmatpush.msra.mxu0 0.0
    %194 = vmatpush.msra.mxu0 0.0
    %195 = vmatpush.msra.mxu0 0.0
    %196 = vmatpush.msra.mxu0 0.0
    %197 = vmatpush.msra.mxu0 0.0
    %198 = vmatpush.msra.mxu0 0.0
    %199 = vmatpush.msra.mxu0 0.0
    %200 = vmatpush.msra.mxu0 0.0
    %201 = vmatpush.msra.mxu0 0.0
    %202 = vmatpush.msra.mxu0 0.0
    %203 = vmatpush.msra.mxu0 0.0
    %204 = vmatpush.msra.mxu0 0.0
    %205 = vmatpush.msra.mxu0 %v181
    %206 = vmatpush.msra.mxu0 %v180
    %207 = vmatpush.msra.mxu0 %v179
    %208 = vmatpush.msra.mxu0 %v178
    %209 = vmatmul.f32.gmra.mxu0 %v191
    %v210 = vpop.f32.mrf.mxu0
    %v211 = vadd.f32 %v189, %v210
    %212 = vdwg.mxu0
    %vm213 = vcmask 57344
    %214 = vst.msk [vmem:[#allocation3] sm:$0x1] %vm213, %v211
    // Predicated region
    $region30: #{feed_forward_network.1} parent=1 // pred_check
      _
    $region31: #{feed_forward_network.1} parent=1 // pred_check_branch
      %216 = sbr.rel (0) target = $region33
    $region32: #{feed_forward_network.1} parent=1 // pred_region
      %218 = vsyncadd [#allocation4], 0
      %s220 = sshll.u32 [#allocation3], 4
      %s221 = int_to_ptr.vmem [resolvable:$true] %s220
      %s222 = sshll.u32 %s7, 4
      %s223 = int_to_ptr.hbm [resolvable:$true] %s222
      %225 = dma.vmem_to_hbm [thread:$0]  %s221, 16, %s223, [#allocation4]
    $region33: #{feed_forward_network.1} parent=1 // pred_fallthru
      _
    // Predicated region
    $region34: #{feed_forward_network.1} parent=1 // pred_check
      _
    $region35: #{feed_forward_network.1} parent=1 // pred_check_branch
      %227 = sbr.rel (0) target = $region37
    $region36: #{feed_forward_network.1} parent=1 // pred_region
      %229 = dma.done [#allocation4], 16
    $region37: #{feed_forward_network.1} parent=1 // pred_fallthru
      _
    %230 = vsyncpa [#allocation4], 1

</llo_original>
